<compile_context>
chip_gen: v5e
topology: v5e:2x2
jax: 0.10.0
libtpu: 0.0.40
codegen_flags: <defaults>
</compile_context>

<pallas_src>
import jax
import jax.numpy as jnp
from jax import lax
from jax.experimental import pallas as pl
from jax.experimental.pallas import tpu as pltpu


_BLOCK_N = 8  # batch tile (multiple of the 8-row f32 sublane tile)


def _round_up(x, m):
    return (x + m - 1) // m * m


def _sparse_linear_kernel(idx_ref, off_ref, table_ref, bias_ref, out_ref):
    """Fused SparseLinear forward for one batch tile.

    idx_ref   : (Nblk, F)     int32  raw per-field indices
    off_ref   : (1, F)        int32  per-field offsets into the flat table
    table_ref : (Vpad, Dpad)  f32    embedding table (zero-padded)
    bias_ref  : (1, Dpad)     f32    bias (zero-padded)
    out_ref   : (Nblk, Dpad)  f32
    """
    nblk, nfields = idx_ref.shape
    vpad = table_ref.shape[0]

    # offset add fused into the kernel
    idx = idx_ref[...] + off_ref[...]                          # (Nblk, F) int32

    # multi-hot indicator of the selected table rows (counts add up if two
    # fields ever hit the same flat row -> matches gather + sum semantics)
    row_ids = lax.broadcasted_iota(jnp.int32, (nblk, vpad), 1)  # (Nblk, Vpad)
    multi_hot = jnp.zeros((nblk, vpad), jnp.float32)
    for f in range(nfields):                                    # static unroll, F small
        multi_hot += (row_ids == idx[:, f:f + 1]).astype(jnp.float32)

    # gather + field-sum + bias == one MXU matmul + broadcast add
    out_ref[...] = (
        jnp.dot(multi_hot, table_ref[...], preferred_element_type=jnp.float32)
        + bias_ref[...])


@jax.jit
def sparse_linear_forward(x, offsets, table, bias):
    """x: (N, F) int indices; offsets: (F,) int; table: (V, D) f32; bias: (D,) f32."""
    n, nfields = x.shape
    v, d = table.shape

    vpad = _round_up(v, 128)          # lane-dense contraction dim
    dpad = _round_up(d, 128)          # lane-dense output (unmasked stores)
    npad = _round_up(n, _BLOCK_N)     # sublane-aligned batch

    idx = jnp.zeros((npad, nfields), jnp.int32).at[:n].set(x.astype(jnp.int32))
    off = offsets.astype(jnp.int32).reshape(1, nfields)
    tbl = jnp.zeros((vpad, dpad), jnp.float32).at[:v, :d].set(
        table.astype(jnp.float32))
    b = jnp.zeros((1, dpad), jnp.float32).at[0, :d].set(
        bias.reshape(-1).astype(jnp.float32))

    out = pl.pallas_call(
        _sparse_linear_kernel,
        out_shape=jax.ShapeDtypeStruct((npad, dpad), jnp.float32),
        grid_spec=pltpu.PrefetchScalarGridSpec(
            num_scalar_prefetch=0,
            grid=(npad // _BLOCK_N,),
            in_specs=[
                pl.BlockSpec((_BLOCK_N, nfields), lambda i: (i, 0)),   # indices tile
                pl.BlockSpec((1, nfields), lambda i: (0, 0)),          # offsets
                pl.BlockSpec((vpad, dpad), lambda i: (0, 0)),          # full table
                pl.BlockSpec((1, dpad), lambda i: (0, 0)),             # bias
            ],
            out_specs=pl.BlockSpec((_BLOCK_N, dpad), lambda i: (i, 0)),
        ),
        compiler_params=pltpu.CompilerParams(
            dimension_semantics=("parallel",)),
    )(idx, off, tbl, b)

    return out[:n, :d]


if __name__ == "__main__":
    # Small shapes consistent with the module: 4 categorical fields, 16-dim output.
    field_dims = (10, 20, 30, 40)      # flat vocab = 100 -> padded to 128 in-kernel
    output_dim = 16                    # -> padded to 128 lanes in-kernel
    N = 6                              # -> padded to 8 sublanes in-kernel

    key = jax.random.PRNGKey(0)
    k_tbl, k_bias, k_x = jax.random.split(key, 3)

    vocab = sum(field_dims)
    table = 0.1 * jax.random.normal(k_tbl, (vocab, output_dim), jnp.float32)
    bias = 0.1 * jax.random.normal(k_bias, (output_dim,), jnp.float32)

    # offsets = (0, *cumsum(field_dims)[:-1]) as in the PyTorch module
    offs = [0]
    for fd in field_dims[:-1]:
        offs.append(offs[-1] + fd)
    offsets = jnp.array(offs, jnp.int32)

    # per-field indices, each within its own field's vocabulary
    x = jnp.stack(
        [jax.random.randint(jax.random.fold_in(k_x, f), (N,), 0, fd, jnp.int32)
         for f, fd in enumerate(field_dims)],
        axis=1)                                                  # (N, F)

    out = sparse_linear_forward(x, offsets, table, bias)
    jax.block_until_ready(out)

    # pure-JAX reference: embedding gather + field-sum + bias
    flat_idx = x + offsets[None, :]
    ref = jnp.sum(table[flat_idx], axis=1) + bias[None, :]

    assert out.shape == (N, output_dim)
    assert jnp.allclose(out, ref, atol=1e-5, rtol=1e-5), float(
        jnp.max(jnp.abs(out - ref)))
    print("KERNEL_OK")
</pallas_src>

<mosaic_0001>
module attributes {stable_mosaic.version = 11 : i64} {
  func.func @_sparse_linear_kernel(%arg0: i32, %arg1: memref<8x4xi32, #tpu.memory_space<vmem>>, %arg2: memref<1x4xi32, #tpu.memory_space<vmem>>, %arg3: memref<128x128xf32, #tpu.memory_space<vmem>>, %arg4: memref<1x128xf32, #tpu.memory_space<vmem>>, %arg5: memref<8x128xf32, #tpu.memory_space<vmem>>) attributes {dimension_semantics = [#tpu.dimension_semantics<parallel>], iteration_bounds = array<i64: 1>, scalar_prefetch = 0 : i64, scratch_operands = 0 : i64, tpu.core_type = #tpu.core_type<tc>, window_params = [{transform_indices = @transform_0, window_bounds = array<i64: 8, 4>}, {pipeline_mode = #tpu.pipeline_mode<synchronous>, transform_indices = @transform_1, window_bounds = array<i64: 1, 4>}, {pipeline_mode = #tpu.pipeline_mode<synchronous>, transform_indices = @transform_2, window_bounds = array<i64: 128, 128>}, {pipeline_mode = #tpu.pipeline_mode<synchronous>, transform_indices = @transform_3, window_bounds = array<i64: 1, 128>}, {transform_indices = @transform_4, window_bounds = array<i64: 8, 128>}]} {
    %c0 = arith.constant 0 : index
    %c0_0 = arith.constant 0 : index
    %0 = vector.load %arg1[%c0, %c0_0] : memref<8x4xi32, #tpu.memory_space<vmem>>, vector<8x4xi32>
    %c0_1 = arith.constant 0 : index
    %c0_2 = arith.constant 0 : index
    %1 = vector.load %arg2[%c0_1, %c0_2] : memref<1x4xi32, #tpu.memory_space<vmem>>, vector<1x4xi32>
    %2 = vector.broadcast %1 : vector<1x4xi32> to vector<8x4xi32>
    %3 = arith.addi %0, %2 : vector<8x4xi32>
    %4 = tpu.iota {dimensions = array<i32: 1>} : vector<8x128xi32>
    %cst = arith.constant 0.000000e+00 : f32
    %5 = vector.broadcast %cst : f32 to vector<8x128xf32>
    %6 = vector.extract_strided_slice %3 {offsets = [0, 0], sizes = [8, 1], strides = [1, 1]} : vector<8x4xi32> to vector<8x1xi32>
    %7 = vector.broadcast %6 : vector<8x1xi32> to vector<8x128xi32>
    %8 = arith.cmpi eq, %4, %7 : vector<8x128xi32>
    %9 = arith.extui %8 : vector<8x128xi1> to vector<8x128xi32>
    %10 = arith.sitofp %9 : vector<8x128xi32> to vector<8x128xf32>
    %11 = arith.addf %5, %10 : vector<8x128xf32>
    %12 = vector.extract_strided_slice %3 {offsets = [0, 1], sizes = [8, 1], strides = [1, 1]} : vector<8x4xi32> to vector<8x1xi32>
    %13 = vector.broadcast %12 : vector<8x1xi32> to vector<8x128xi32>
    %14 = arith.cmpi eq, %4, %13 : vector<8x128xi32>
    %15 = arith.extui %14 : vector<8x128xi1> to vector<8x128xi32>
    %16 = arith.sitofp %15 : vector<8x128xi32> to vector<8x128xf32>
    %17 = arith.addf %11, %16 : vector<8x128xf32>
    %18 = vector.extract_strided_slice %3 {offsets = [0, 2], sizes = [8, 1], strides = [1, 1]} : vector<8x4xi32> to vector<8x1xi32>
    %19 = vector.broadcast %18 : vector<8x1xi32> to vector<8x128xi32>
    %20 = arith.cmpi eq, %4, %19 : vector<8x128xi32>
    %21 = arith.extui %20 : vector<8x128xi1> to vector<8x128xi32>
    %22 = arith.sitofp %21 : vector<8x128xi32> to vector<8x128xf32>
    %23 = arith.addf %17, %22 : vector<8x128xf32>
    %24 = vector.extract_strided_slice %3 {offsets = [0, 3], sizes = [8, 1], strides = [1, 1]} : vector<8x4xi32> to vector<8x1xi32>
    %25 = vector.broadcast %24 : vector<8x1xi32> to vector<8x128xi32>
    %26 = arith.cmpi eq, %4, %25 : vector<8x128xi32>
    %27 = arith.extui %26 : vector<8x128xi1> to vector<8x128xi32>
    %28 = arith.sitofp %27 : vector<8x128xi32> to vector<8x128xf32>
    %29 = arith.addf %23, %28 : vector<8x128xf32>
    %c0_3 = arith.constant 0 : index
    %c0_4 = arith.constant 0 : index
    %30 = vector.load %arg3[%c0_3, %c0_4] : memref<128x128xf32, #tpu.memory_space<vmem>>, vector<128x128xf32>
    %cst_5 = arith.constant dense<0.000000e+00> : vector<8x128xf32>
    %31 = tpu.matmul %29, %30, %cst_5 {dimension_numbers = #tpu.dot_dimension_numbers<[1], [0], [0], [1], [0, 0, 1, 1], [], []>} : vector<8x128xf32>, vector<128x128xf32>, vector<8x128xf32> -> vector<8x128xf32>
    %c0_6 = arith.constant 0 : index
    %c0_7 = arith.constant 0 : index
    %32 = vector.load %arg4[%c0_6, %c0_7] : memref<1x128xf32, #tpu.memory_space<vmem>>, vector<1x128xf32>
    %33 = vector.broadcast %32 : vector<1x128xf32> to vector<8x128xf32>
    %34 = arith.addf %31, %33 : vector<8x128xf32>
    %c0_8 = arith.constant 0 : index
    %c0_9 = arith.constant 0 : index
    %35 = vector.load %arg5[%c0_8, %c0_9] : memref<8x128xf32, #tpu.memory_space<vmem>>, vector<8x128xf32>
    tpu.vector_store %arg5[%c0_8, %c0_9], %34 {strides = array<i32>} : memref<8x128xf32, #tpu.memory_space<vmem>>, vector<8x128xf32>,
    return
  }
  func.func @transform_0(%arg0: i32) -> (i32, i32) {
    %c0_i32 = arith.constant 0 : i32
    %c0_i32_0 = arith.constant 0 : i32
    return %arg0, %c0_i32 : i32, i32
  }
  func.func @transform_1(%arg0: i32) -> (i32, i32) {
    %c0_i32 = arith.constant 0 : i32
    %c0_i32_0 = arith.constant 0 : i32
    %c0_i32_1 = arith.constant 0 : i32
    return %c0_i32, %c0_i32_0 : i32, i32
  }
  func.func @transform_2(%arg0: i32) -> (i32, i32) {
    %c0_i32 = arith.constant 0 : i32
    %c0_i32_0 = arith.constant 0 : i32
    %c0_i32_1 = arith.constant 0 : i32
    return %c0_i32, %c0_i32_0 : i32, i32
  }
  func.func @transform_3(%arg0: i32) -> (i32, i32) {
    %c0_i32 = arith.constant 0 : i32
    %c0_i32_0 = arith.constant 0 : i32
    %c0_i32_1 = arith.constant 0 : i32
    return %c0_i32, %c0_i32_0 : i32, i32
  }
  func.func @transform_4(%arg0: i32) -> (i32, i32) {
    %c0_i32 = arith.constant 0 : i32
    %c0_i32_0 = arith.constant 0 : i32
    return %arg0, %c0_i32 : i32, i32
  }
}

</mosaic_0001>

<llo_original>
// kernel: sparse_linear_forward.1
$region0: #{sparse_linear_forward.1}
  #allocation0 [shape = 'u32[]', space=smem, size = 0x4, offset = 0x4, fixed_abs, tag = 'smem constant byte address 0x4 - core index']
  #allocation1 [shape = 'u32[72,128]{1,0:T(1,128)}', space=vmem, size = 0x9000, scoped, tag = 'internal scratch']
  %s0 = inlined_call_operand.vmem [shape: s32[8,4], index: 0, kind: input, shape index: {}]
  %s1 = inlined_call_operand.vmem [shape: s32[1,4], index: 1, kind: input, shape index: {}]
  %s2 = inlined_call_operand.vmem [shape: f32[128,128], index: 2, kind: input, shape index: {}]
  %s3 = inlined_call_operand.vmem [shape: f32[1,128], index: 3, kind: input, shape index: {}]
  %s4 = inlined_call_operand.hbm [shape: f32[8,128], index: 4, kind: output, shape index: {}]
  %s5 = sld [smem:[#allocation0]]
  $region26: #{sparse_linear_forward.1} parent=0
    _
  %s7 = ssub.s32 1, %s5
  %s8 = scalar_select 0, %s7, %s5
  $region1: #{sparse_linear_forward.1} parent=0
    #allocation2 [shape = 'u8[4096]{0}', space=vmem, size = 0x1000, scoped, tag = 'output window, operand 0, single buffered']
    #allocation3 [shape = 's32[1]{0}', space=sflag, size = 0x4, scoped, tag = 'scoped memory for sparse_linear_forward.1']
    %9 = vsyncpa [#allocation3], 0
    // Predicated region
    $region2: #{sparse_linear_forward.1} parent=1 // pred_check
      _
    $region3: #{sparse_linear_forward.1} parent=1 // pred_check_branch
      %11 = sbr.rel (0) target = $region5
    $region4: #{sparse_linear_forward.1} parent=1 // pred_region
      _
    $region5: #{sparse_linear_forward.1} parent=1 // pred_fallthru
      _
    // Predicated region
    $region6: #{sparse_linear_forward.1} parent=1 // pred_check
      _
    $region7: #{sparse_linear_forward.1} parent=1 // pred_check_branch
      %13 = sbr.rel (0) target = $region9
    $region8: #{sparse_linear_forward.1} parent=1 // pred_region
      _
    $region9: #{sparse_linear_forward.1} parent=1 // pred_fallthru
      _
    // Predicated region
    $region10: #{sparse_linear_forward.1} parent=1 // pred_check
      _
    $region11: #{sparse_linear_forward.1} parent=1 // pred_check_branch
      %15 = sbr.rel (0) target = $region13
    $region12: #{sparse_linear_forward.1} parent=1 // pred_region
      _
    $region13: #{sparse_linear_forward.1} parent=1 // pred_fallthru
      _
    // Predicated region
    $region14: #{sparse_linear_forward.1} parent=1 // pred_check
      _
    $region15: #{sparse_linear_forward.1} parent=1 // pred_check_branch
      %17 = sbr.rel (0) target = $region17
    $region16: #{sparse_linear_forward.1} parent=1 // pred_region
      _
    $region17: #{sparse_linear_forward.1} parent=1 // pred_fallthru
      _
    %v18 = vld [vmem:[%s0] sm:$0xff]
    %v19 = vld [vmem:[%s1] sm:$0x1]
    %v20 = vperm.slane %v19, 0
    %v21 = vadd.s32 %v18, %v20
    %v22 = vlaneseq
    %v23 = vand.u32 %v22, 127
    %24 = vset.pattern.permute.xlu0 0
    %25 = vperm.xlu0 %24, %v21
    %v26 = vpop.permute.xlu0 %25
    %vm27 = vcmp.eq.s32.totalorder %v23, %v26
    %v28 = vsel %vm27, 1, 0
    %v29 = vcvt.s32.f32 %v28
    %v30 = vadd.f32 %v29, 0.0
    %31 = vset.pattern.permute.xlu0 1
    %32 = vperm.xlu0 %31, %v21
    %v33 = vpop.permute.xlu0 %32
    %vm34 = vcmp.eq.s32.totalorder %v23, %v33
    %v35 = vsel %vm34, 1, 0
    %v36 = vcvt.s32.f32 %v35
    %v37 = vadd.f32 %v30, %v36
    %38 = vset.pattern.permute.xlu0 2
    %39 = vperm.xlu0 %38, %v21
    %v40 = vpop.permute.xlu0 %39
    %vm41 = vcmp.eq.s32.totalorder %v23, %v40
    %v42 = vsel %vm41, 1, 0
    %v43 = vcvt.s32.f32 %v42
    %v44 = vadd.f32 %v37, %v43
    %45 = vset.pattern.permute.xlu0 3
    %46 = vperm.xlu0 %45, %v21
    %v47 = vpop.permute.xlu0 %46
    %vm48 = vcmp.eq.s32.totalorder %v23, %v47
    %v49 = vsel %vm48, 1, 0
    %v50 = vcvt.s32.f32 %v49
    %v51 = vadd.f32 %v44, %v50
    %v52 = vld [vmem:[%s2] sm:$0xff]
    %v53 = vld [vmem:[%s2 + $0x8] sm:$0xff]
    %v54 = vld [vmem:[%s2 + $0x10] sm:$0xff]
    %v55 = vld [vmem:[%s2 + $0x18] sm:$0xff]
    %v56 = vld [vmem:[%s2 + $0x20] sm:$0xff]
    %v57 = vld [vmem:[%s2 + $0x28] sm:$0xff]
    %v58 = vld [vmem:[%s2 + $0x30] sm:$0xff]
    %v59 = vld [vmem:[%s2 + $0x38] sm:$0xff]
    %v60 = vld [vmem:[%s2 + $0x40] sm:$0xff]
    %v61 = vld [vmem:[%s2 + $0x48] sm:$0xff]
    %v62 = vld [vmem:[%s2 + $0x50] sm:$0xff]
    %v63 = vld [vmem:[%s2 + $0x58] sm:$0xff]
    %v64 = vld [vmem:[%s2 + $0x60] sm:$0xff]
    %v65 = vld [vmem:[%s2 + $0x68] sm:$0xff]
    %v66 = vld [vmem:[%s2 + $0x70] sm:$0xff]
    %v67 = vld [vmem:[%s2 + $0x78] sm:$0xff]
    %v68 = vld [vmem:[%s3] sm:$0x1]
    %v70 = vperm.slane %v68, 0
    %72 = vmatpush.msra.mxu0 %v67
    %73 = vmatpush.msra.mxu0 %v66
    %74 = vmatpush.msra.mxu0 %v65
    %75 = vmatpush.msra.mxu0 %v64
    %76 = vmatpush.msra.mxu0 %v63
    %77 = vmatpush.msra.mxu0 %v62
    %78 = vmatpush.msra.mxu0 %v61
    %79 = vmatpush.msra.mxu0 %v60
    %80 = vmatpush.msra.mxu0 %v59
    %81 = vmatpush.msra.mxu0 %v58
    %82 = vmatpush.msra.mxu0 %v57
    %83 = vmatpush.msra.mxu0 %v56
    %84 = vmatpush.msra.mxu0 %v55
    %85 = vmatpush.msra.mxu0 %v54
    %86 = vmatpush.msra.mxu0 %v53
    %87 = vmatpush.msra.mxu0 %v52
    %88 = vmatmul.f32.gmra.mxu0 %v51
    %v89 = vpop.f32.mrf.mxu0
    %v90 = vadd.f32 %v70, %v89
    %91 = vdwg.mxu0
    %92 = vst [vmem:[#allocation2] sm:$0xff] %v90
    // Predicated region
    $region18: #{sparse_linear_forward.1} parent=1 // pred_check
      _
    $region19: #{sparse_linear_forward.1} parent=1 // pred_check_branch
      %94 = sbr.rel (0) target = $region21
    $region20: #{sparse_linear_forward.1} parent=1 // pred_region
      %96 = vsyncadd [#allocation3], 0
      %s98 = sshll.u32 [#allocation2], 4
      %s99 = int_to_ptr.vmem [resolvable:$true] %s98
      %s100 = sshll.u32 %s4, 4
      %s101 = int_to_ptr.hbm [resolvable:$true] %s100
      %103 = dma.vmem_to_hbm [thread:$0]  %s99, 128, %s101, [#allocation3]
    $region21: #{sparse_linear_forward.1} parent=1 // pred_fallthru
      _
    // Predicated region
    $region22: #{sparse_linear_forward.1} parent=1 // pred_check
      _
    $region23: #{sparse_linear_forward.1} parent=1 // pred_check_branch
      %105 = sbr.rel (0) target = $region25
    $region24: #{sparse_linear_forward.1} parent=1 // pred_region
      %107 = dma.done [#allocation3], 128
    $region25: #{sparse_linear_forward.1} parent=1 // pred_fallthru
      _
    %108 = vsyncpa [#allocation3], 1

</llo_original>
